<compile_context>
chip_gen: v6e
topology: v6e:2x2x1
jax: 0.10.0
libtpu: 0.0.40
codegen_flags: <defaults>
</compile_context>

<pallas_src>
import functools
import math
import sys

import jax
import jax.numpy as jnp
from jax.experimental import pallas as pl
from jax.experimental.pallas import tpu as pltpu


def _round_up(x, m):
    return (x + m - 1) // m * m


def _device_vmem_bytes():
    """Physical VMEM per TensorCore; conservative 64 MiB (v7x) fallback."""
    try:
        cap = getattr(pltpu.get_tpu_info(), "vmem_capacity_bytes", None)
        if cap:
            return int(cap)
    except Exception:  # best-effort hardware query only
        pass
    return 64 * 1024 * 1024


def ff_kernel(x_ref, w1_ref, w2_ref, c_ref, o_ref, *, pre_ln, h_valid, h_padded):
    """One row-tile of FF: (LayerNorm) -> fc1 -> exact GELU -> fc2 -> +residual.

    x_ref:  (rt, Hp) activations (upcast to f32 here)
    w1_ref: (Hp, Hp) bf16 weight, (in, out) layout
    w2_ref: (Hp, Hp) bf16 weight, (in, out) layout
    c_ref:  (2 or 4, Hp) f32 constants: [b1, b2] (+ [gamma, beta] if pre_ln)
    Lanes H..Hp-1 are zero-padded in every operand, so padded lanes stay zero.
    """
    x = x_ref[...].astype(jnp.float32)
    residual = x

    if pre_ln:
        # nn.LayerNorm(dim_H, eps=1e-06)
        if h_valid == h_padded:
            mean = jnp.mean(x, axis=-1, keepdims=True)
            var = jnp.mean((x - mean) ** 2, axis=-1, keepdims=True)
        else:
            # Padded lanes are zero, so sums over Hp equal sums over the valid
            # H lanes; divide by the real H and use E[x^2] - mean^2.
            inv_h = 1.0 / h_valid
            mean = jnp.sum(x, axis=-1, keepdims=True) * inv_h
            var = jnp.maximum(
                jnp.sum(x * x, axis=-1, keepdims=True) * inv_h - mean * mean, 0.0)
        x = (x - mean) * jax.lax.rsqrt(var + 1e-6)
        # gamma/beta are zero in padded lanes -> padded lanes return to 0.
        x = x * c_ref[2:3, :] + c_ref[3:4, :]

    # fc1: bf16 operands, f32 accumulation (full-rate MXU, half the weight bytes)
    h = jnp.dot(x.astype(jnp.bfloat16), w1_ref[...],
                preferred_element_type=jnp.float32) + c_ref[0:1, :]

    # exact GELU, matching the torch.erf formulation of the module
    h = h * 0.5 * (1.0 + jax.lax.erf(h * (1.0 / math.sqrt(2.0))))

    # fc2
    out = jnp.dot(h.astype(jnp.bfloat16), w2_ref[...],
                  preferred_element_type=jnp.float32) + c_ref[1:2, :]

    # dropout(p=0.0) / eval-mode dropout == identity
    o_ref[...] = (out + residual).astype(o_ref.dtype)


_LoweringError = getattr(pltpu, "LoweringException", RuntimeError)
_BUILD_FALLBACK_ERRORS = (AttributeError, NotImplementedError, RuntimeError,
                          TypeError, ValueError, _LoweringError)


def _build_ff_call(n_rows, hp, nconst, out_dtype, *, pre_ln, h_valid, row_tile,
                   single_buffer_params, vmem_limit_bytes):
    def const_spec(shape):
        # Grid-invariant params: single-buffer so they are not duplicated in
        # VMEM; default double-buffering if the pipeline_mode hint is rejected.
        if single_buffer_params:
            return pl.BlockSpec(shape, lambda i: (0, 0),
                                pipeline_mode=pl.Buffered(1))
        return pl.BlockSpec(shape, lambda i: (0, 0))

    kernel = functools.partial(ff_kernel, pre_ln=pre_ln, h_valid=h_valid,
                               h_padded=hp)
    return pl.pallas_call(
        kernel,
        out_shape=jax.ShapeDtypeStruct((n_rows, hp), out_dtype),
        grid_spec=pltpu.PrefetchScalarGridSpec(
            num_scalar_prefetch=0,
            grid=(pl.cdiv(n_rows, row_tile),),
            in_specs=[
                pl.BlockSpec((row_tile, hp), lambda i: (i, 0)),  # x row tile
                const_spec((hp, hp)),        # W1 (in,out) bf16
                const_spec((hp, hp)),        # W2 (in,out) bf16
                const_spec((nconst, hp)),    # [b1, b2, (gamma, beta)] f32
            ],
            out_specs=pl.BlockSpec((row_tile, hp), lambda i: (i, 0)),
        ),
        compiler_params=pltpu.CompilerParams(
            dimension_semantics=("parallel",),   # megacore-shard the row axis
            vmem_limit_bytes=vmem_limit_bytes,
        ),
    )


def prepare_ff_params(w1, b1, w2, b2, gamma=None, beta=None, *, pre_ln=False,
                      lane_pad_max_ratio=1.5):
    """One-time parameter prep (call once at init, NOT per forward)."""
    H = int(w1.shape[0])
    hp = _round_up(H, 128)
    if hp != H and hp > lane_pad_max_ratio * H:
        hp = H  # padding would dominate HBM traffic (H << 128): keep native H

    def pad_vec(v):
        v = jnp.asarray(v, jnp.float32).reshape(-1)
        return v if hp == H else jnp.pad(v, (0, hp - H))

    def pad_w(w):  # (out,in) -> (in,out), zero-pad both dims, cast to bf16
        w_io = jnp.asarray(w, jnp.float32).T
        if hp != H:
            w_io = jnp.pad(w_io, ((0, hp - H), (0, hp - H)))
        return w_io.astype(jnp.bfloat16)

    consts = [pad_vec(b1), pad_vec(b2)]
    if pre_ln:
        assert gamma is not None and beta is not None
        consts += [pad_vec(gamma), pad_vec(beta)]
    return dict(w1=pad_w(w1), w2=pad_w(w2), consts=jnp.stack(consts),
                h=H, hp=int(hp), pre_ln=bool(pre_ln))


def ff_forward(x, params, *, row_tile=512):
    """FF forward on a [..., H] input using params from prepare_ff_params."""
    H, Hp, pre_ln = params["h"], params["hp"], params["pre_ln"]
    orig_shape = x.shape
    assert orig_shape[-1] == H, (orig_shape, H)
    N = math.prod(orig_shape[:-1])

    xf = x.reshape(N, H)
    if Hp != H:
        xf = jnp.pad(xf, ((0, 0), (0, Hp - H)))  # zero lanes H..Hp-1

    # Row tile: fill the MXU M dim and amortize per-grid-step overhead,
    # 256-aligned when large, never (much) larger than N. Ragged last block is
    # handled by Pallas OOB read-padding / write-masking — no row pad copy.
    rt = _round_up(min(max(N, 8), row_tile), 8)
    if rt >= 256:
        rt = _round_up(rt, 256)

    nconst = params["consts"].shape[0]
    in_bytes = jnp.dtype(x.dtype).itemsize
    cap = _device_vmem_bytes()

    # TODO(synk): for very large H the two (Hp,Hp) weights stop being
    # comfortably VMEM-resident (mainly on 64 MiB v7x); that regime needs a
    # K/N-tiled grid with a f32 accumulator instead of full weight blocks.
    if 2 * 2 * Hp * Hp * 2 > cap // 3:
        raise ValueError(
            f"H={H} (padded {Hp}) too large for the weights-resident FF kernel")

    needed = (2 * 2 * rt * Hp * in_bytes       # x + out tiles, double-buffered
              + 2 * 2 * Hp * Hp * 2            # bf16 W1 + W2 (<= 2 buffers)
              + 2 * nconst * Hp * 4            # merged constants
              + 6 * rt * Hp * 4)               # f32 intermediates headroom
    vmem_limit = int(min(max(2 * needed, 32 * 1024 * 1024), (3 * cap) // 4))

    args = (xf, params["w1"], params["w2"], params["consts"])
    build = functools.partial(
        _build_ff_call, N, Hp, nconst, x.dtype, pre_ln=pre_ln, h_valid=H,
        row_tile=rt, vmem_limit_bytes=vmem_limit)
    try:
        out = build(single_buffer_params=True)(*args)
    except _BUILD_FALLBACK_ERRORS as e:
        print(f"ff_forward: single-buffered const params rejected "
              f"({type(e).__name__}); using default double-buffering.",
              file=sys.stderr)
        out = build(single_buffer_params=False)(*args)

    if Hp != H:
        out = out[:, :H]
    return out.reshape(orig_shape)


def ff_reference(x, w1, b1, w2, b2, gamma, beta, *, pre_ln=False):
    """Pure-JAX reference matching the PyTorch forward, with the same
    bf16-operand / f32-accumulate matmul precision as the kernel."""
    residual = x.astype(jnp.float32)
    h = x.astype(jnp.float32)
    if pre_ln:
        mean = jnp.mean(h, axis=-1, keepdims=True)
        var = jnp.mean((h - mean) ** 2, axis=-1, keepdims=True)
        h = (h - mean) / jnp.sqrt(var + 1e-6) * gamma + beta
    h = jnp.dot(h.astype(jnp.bfloat16), w1.T.astype(jnp.bfloat16),
                preferred_element_type=jnp.float32) + b1
    h = h * 0.5 * (1.0 + jax.lax.erf(h / math.sqrt(2.0)))
    h = jnp.dot(h.astype(jnp.bfloat16), w2.T.astype(jnp.bfloat16),
                preferred_element_type=jnp.float32) + b2
    return h + residual


if __name__ == "__main__":
    base = jax.random.PRNGKey(0)
    configs = [
        (2, 8, 32, False),   # module default (ln = Identity), lane-native H
        (2, 8, 32, True),    # pre-LN path
        (2, 8, 200, True),   # H=200 -> kernel runs on H zero-padded to 256
    ]
    ok = True
    for idx, (B, S, H, pre_ln) in enumerate(configs):
        ks = jax.random.split(jax.random.fold_in(base, idx), 7)
        bound = 1.0 / math.sqrt(H)   # nn.Linear default init range
        x = jax.random.normal(ks[0], (B, S, H), jnp.float32)
        w1 = jax.random.uniform(ks[1], (H, H), jnp.float32, -bound, bound)
        b1 = jax.random.uniform(ks[2], (H,), jnp.float32, -bound, bound)
        w2 = jax.random.uniform(ks[3], (H, H), jnp.float32, -bound, bound)
        b2 = jax.random.uniform(ks[4], (H,), jnp.float32, -bound, bound)
        gamma = 1.0 + 0.1 * jax.random.normal(ks[5], (H,), jnp.float32)
        beta = 0.1 * jax.random.normal(ks[6], (H,), jnp.float32)

        # One-time prep (transpose, bf16 cast, bias/LN merge, lane padding).
        params = prepare_ff_params(w1, b1, w2, b2, gamma, beta, pre_ln=pre_ln)

        out = jax.block_until_ready(ff_forward(x, params))
        ref = ff_reference(x, w1, b1, w2, b2, gamma, beta, pre_ln=pre_ln)
        ok &= bool(jnp.allclose(out, ref, atol=3e-3, rtol=3e-3))
        ok &= (out.shape == x.shape) and (out.dtype == x.dtype)

    # TODO(synk): dropout_ratio defaults to 0.0 (identity in eval); no RNG
    # dropout mask is emitted for p > 0.
    # TODO(synk): on bandwidth-poor v5e, consider pipeline_mode=pl.Buffered(3)
    # on the x BlockSpec to hide more of the row-tile DMA latency.
    if ok:
        print("KERNEL_OK")
</pallas_src>

<mosaic_0001>
module attributes {stable_mosaic.version = 11 : i64} {
  func.func @ff_kernel(%arg0: i32, %arg1: memref<16x32xf32, #tpu.memory_space<vmem>>, %arg2: memref<32x32xbf16, #tpu.memory_space<vmem>>, %arg3: memref<32x32xbf16, #tpu.memory_space<vmem>>, %arg4: memref<2x32xf32, #tpu.memory_space<vmem>>, %arg5: memref<16x32xf32, #tpu.memory_space<vmem>>) attributes {dimension_semantics = [#tpu.dimension_semantics<parallel>], iteration_bounds = array<i64: 1>, scalar_prefetch = 0 : i64, scratch_operands = 0 : i64, tpu.core_type = #tpu.core_type<tc>, window_params = [{transform_indices = @transform_0, window_bounds = array<i64: 16, 32>}, {pipeline_mode = #tpu.pipeline_mode<synchronous>, transform_indices = @transform_1, window_bounds = array<i64: 32, 32>}, {pipeline_mode = #tpu.pipeline_mode<synchronous>, transform_indices = @transform_2, window_bounds = array<i64: 32, 32>}, {pipeline_mode = #tpu.pipeline_mode<synchronous>, transform_indices = @transform_3, window_bounds = array<i64: 2, 32>}, {transform_indices = @transform_4, window_bounds = array<i64: 16, 32>}]} {
    %c0 = arith.constant 0 : index
    %c0_0 = arith.constant 0 : index
    %0 = vector.load %arg1[%c0, %c0_0] : memref<16x32xf32, #tpu.memory_space<vmem>>, vector<16x32xf32>
    %1 = arith.truncf %0 : vector<16x32xf32> to vector<16x32xbf16>
    %c0_1 = arith.constant 0 : index
    %c0_2 = arith.constant 0 : index
    %2 = vector.load %arg2[%c0_1, %c0_2] : memref<32x32xbf16, #tpu.memory_space<vmem>>, vector<32x32xbf16>
    %cst = arith.constant dense<0.000000e+00> : vector<16x32xf32>
    %3 = tpu.matmul %1, %2, %cst {dimension_numbers = #tpu.dot_dimension_numbers<[1], [0], [0], [1], [0, 0, 1, 1], [], []>} : vector<16x32xbf16>, vector<32x32xbf16>, vector<16x32xf32> -> vector<16x32xf32>
    %c0_3 = arith.constant 0 : index
    %c0_4 = arith.constant 0 : index
    %4 = vector.load %arg4[%c0_3, %c0_4] : memref<2x32xf32, #tpu.memory_space<vmem>>, vector<1x32xf32>
    %5 = vector.broadcast %4 : vector<1x32xf32> to vector<16x32xf32>
    %6 = arith.addf %3, %5 : vector<16x32xf32>
    %cst_5 = arith.constant 5.000000e-01 : f32
    %7 = vector.broadcast %cst_5 : f32 to vector<16x32xf32>
    %8 = arith.mulf %6, %7 : vector<16x32xf32>
    %cst_6 = arith.constant 0.707106769 : f32
    %9 = vector.broadcast %cst_6 : f32 to vector<16x32xf32>
    %10 = arith.mulf %6, %9 : vector<16x32xf32>
    %11 = math.erf %10 : vector<16x32xf32>
    %cst_7 = arith.constant 1.000000e+00 : f32
    %12 = vector.broadcast %cst_7 : f32 to vector<16x32xf32>
    %13 = arith.addf %12, %11 : vector<16x32xf32>
    %14 = arith.mulf %8, %13 : vector<16x32xf32>
    %15 = arith.truncf %14 : vector<16x32xf32> to vector<16x32xbf16>
    %c0_8 = arith.constant 0 : index
    %c0_9 = arith.constant 0 : index
    %16 = vector.load %arg3[%c0_8, %c0_9] : memref<32x32xbf16, #tpu.memory_space<vmem>>, vector<32x32xbf16>
    %cst_10 = arith.constant dense<0.000000e+00> : vector<16x32xf32>
    %17 = tpu.matmul %15, %16, %cst_10 {dimension_numbers = #tpu.dot_dimension_numbers<[1], [0], [0], [1], [0, 0, 1, 1], [], []>} : vector<16x32xbf16>, vector<32x32xbf16>, vector<16x32xf32> -> vector<16x32xf32>
    %c1 = arith.constant 1 : index
    %c0_11 = arith.constant 0 : index
    %18 = vector.load %arg4[%c1, %c0_11] : memref<2x32xf32, #tpu.memory_space<vmem>>, vector<1x32xf32>
    %19 = vector.broadcast %18 : vector<1x32xf32> to vector<16x32xf32>
    %20 = arith.addf %17, %19 : vector<16x32xf32>
    %21 = arith.addf %20, %0 : vector<16x32xf32>
    %c0_12 = arith.constant 0 : index
    %c0_13 = arith.constant 0 : index
    %22 = vector.load %arg5[%c0_12, %c0_13] : memref<16x32xf32, #tpu.memory_space<vmem>>, vector<16x32xf32>
    tpu.vector_store %arg5[%c0_12, %c0_13], %21 {strides = array<i32>} : memref<16x32xf32, #tpu.memory_space<vmem>>, vector<16x32xf32>,
    return
  }
  func.func @transform_0(%arg0: i32) -> (i32, i32) {
    %c0_i32 = arith.constant 0 : i32
    %c0_i32_0 = arith.constant 0 : i32
    return %arg0, %c0_i32 : i32, i32
  }
  func.func @transform_1(%arg0: i32) -> (i32, i32) {
    %c0_i32 = arith.constant 0 : i32
    %c0_i32_0 = arith.constant 0 : i32
    %c0_i32_1 = arith.constant 0 : i32
    return %c0_i32, %c0_i32_0 : i32, i32
  }
  func.func @transform_2(%arg0: i32) -> (i32, i32) {
    %c0_i32 = arith.constant 0 : i32
    %c0_i32_0 = arith.constant 0 : i32
    %c0_i32_1 = arith.constant 0 : i32
    return %c0_i32, %c0_i32_0 : i32, i32
  }
  func.func @transform_3(%arg0: i32) -> (i32, i32) {
    %c0_i32 = arith.constant 0 : i32
    %c0_i32_0 = arith.constant 0 : i32
    %c0_i32_1 = arith.constant 0 : i32
    return %c0_i32, %c0_i32_0 : i32, i32
  }
  func.func @transform_4(%arg0: i32) -> (i32, i32) {
    %c0_i32 = arith.constant 0 : i32
    %c0_i32_0 = arith.constant 0 : i32
    return %arg0, %c0_i32 : i32, i32
  }
}

</mosaic_0001>

<llo_original>
// kernel: tpu_custom_call.1
$region0: #{tpu_custom_call.1}
  #allocation0 [shape = 'u32[]', space=smem, size = 0x4, offset = 0x4, fixed_abs, tag = 'smem constant byte address 0x4 - core index']
  #allocation1 [shape = 'u32[144,128]{1,0:T(1,128)}', space=vmem, size = 0x12000, scoped, tag = 'internal scratch']
  %s0 = inlined_call_operand.hbm [shape: f32[16,32], index: 0, kind: input, shape index: {}]
  %s1 = inlined_call_operand.hbm [shape: bf16[32,32], index: 1, kind: input, shape index: {}]
  %s2 = inlined_call_operand.hbm [shape: bf16[32,32], index: 2, kind: input, shape index: {}]
  %s3 = inlined_call_operand.vmem [shape: f32[2,32], index: 3, kind: input, shape index: {}]
  %s4 = inlined_call_operand.hbm [shape: f32[16,32], index: 4, kind: output, shape index: {}]
  %s5 = sld [smem:[#allocation0]]
  $region38: #{tpu_custom_call.1} parent=0
    _
  %s7 = ssub.s32 1, %s5
  %s8 = scalar_select 0, %s7, %s5
  $region1: #{tpu_custom_call.1} parent=0
    #allocation2 [shape = 'u8[8192]{0}', space=vmem, size = 0x2000, scoped, tag = 'input window, operand 0, single buffered']
    #allocation3 [shape = 's32[1]{0}', space=sflag, size = 0x4, scoped, tag = 'scoped memory for tpu_custom_call.1']
    #allocation4 [shape = 's32[1]{0}', space=sflag, size = 0x4, scoped, tag = 'scoped memory for tpu_custom_call.1']
    #allocation5 [shape = 'u8[8192]{0}', space=vmem, size = 0x2000, scoped, tag = 'input window, operand 1, single buffered']
    #allocation6 [shape = 's32[1]{0}', space=sflag, size = 0x4, scoped, tag = 'scoped memory for tpu_custom_call.1']
    #allocation7 [shape = 'u8[8192]{0}', space=vmem, size = 0x2000, scoped, tag = 'input window, operand 2, single buffered']
    #allocation8 [shape = 'u8[8192]{0}', space=vmem, size = 0x2000, scoped, tag = 'output window, operand 0, single buffered']
    %9 = vsyncpa [#allocation3], 0
    %10 = vsyncpa [#allocation6], 0
    %11 = vsyncpa [#allocation4], 0
    // Predicated region
    $region2: #{tpu_custom_call.1} parent=1 // pred_check
      _
    $region3: #{tpu_custom_call.1} parent=1 // pred_check_branch
      %13 = sbr.rel (0) target = $region5
    $region4: #{tpu_custom_call.1} parent=1 // pred_region
      %s15 = ssub.s32 256, 256
      %16 = vsyncadd [#allocation3], %s15
      %s17 = sshll.u32 [#allocation2], 4
      %s18 = int_to_ptr.vmem [resolvable:$true] %s17
      %23 = dma.hbm_to_vmem [thread:$0]  %s0, 256, %s18, [#allocation3], 128, 128, 8
    $region5: #{tpu_custom_call.1} parent=1 // pred_fallthru
      _
    // Predicated region
    $region6: #{tpu_custom_call.1} parent=1 // pred_check
      _
    $region7: #{tpu_custom_call.1} parent=1 // pred_check_branch
      %25 = sbr.rel (0) target = $region9
    $region8: #{tpu_custom_call.1} parent=1 // pred_region
      %s27 = ssub.s32 256, 256
      %28 = vsyncadd [#allocation6], %s27
      %s29 = sshll.u32 [#allocation5], 4
      %s30 = int_to_ptr.vmem [resolvable:$true] %s29
      %35 = dma.hbm_to_vmem [thread:$0]  %s1, 256, %s30, [#allocation6], 64, 64, 4
    $region9: #{tpu_custom_call.1} parent=1 // pred_fallthru
      _
    // Predicated region
    $region10: #{tpu_custom_call.1} parent=1 // pred_check
      _
    $region11: #{tpu_custom_call.1} parent=1 // pred_check_branch
      %37 = sbr.rel (0) target = $region13
    $region12: #{tpu_custom_call.1} parent=1 // pred_region
      %s39 = ssub.s32 256, 256
      %40 = vsyncadd [#allocation6], %s39
      %s41 = sshll.u32 [#allocation7], 4
      %s42 = int_to_ptr.vmem [resolvable:$true] %s41
      %47 = dma.hbm_to_vmem [thread:$0]  %s2, 256, %s42, [#allocation6], 64, 64, 4
    $region13: #{tpu_custom_call.1} parent=1 // pred_fallthru
      _
    // Predicated region
    $region14: #{tpu_custom_call.1} parent=1 // pred_check
      _
    $region15: #{tpu_custom_call.1} parent=1 // pred_check_branch
      %49 = sbr.rel (0) target = $region17
    $region16: #{tpu_custom_call.1} parent=1 // pred_region
      _
    $region17: #{tpu_custom_call.1} parent=1 // pred_fallthru
      _
    // Predicated region
    $region18: #{tpu_custom_call.1} parent=1 // pred_check
      _
    $region19: #{tpu_custom_call.1} parent=1 // pred_check_branch
      %51 = sbr.rel (0) target = $region21
    $region20: #{tpu_custom_call.1} parent=1 // pred_region
      %52 = dma.done [#allocation3], 256
    $region21: #{tpu_custom_call.1} parent=1 // pred_fallthru
      _
    // Predicated region
    $region22: #{tpu_custom_call.1} parent=1 // pred_check
      _
    $region23: #{tpu_custom_call.1} parent=1 // pred_check_branch
      %54 = sbr.rel (0) target = $region25
    $region24: #{tpu_custom_call.1} parent=1 // pred_region
      %55 = dma.done [#allocation6], 256
    $region25: #{tpu_custom_call.1} parent=1 // pred_fallthru
      _
    // Predicated region
    $region26: #{tpu_custom_call.1} parent=1 // pred_check
      _
    $region27: #{tpu_custom_call.1} parent=1 // pred_check_branch
      %57 = sbr.rel (0) target = $region29
    $region28: #{tpu_custom_call.1} parent=1 // pred_region
      %58 = dma.done [#allocation6], 256
    $region29: #{tpu_custom_call.1} parent=1 // pred_fallthru
      _
    %v60 = vld [vmem:[#allocation2] sm:$0xff]
    %v61 = vld [vmem:[#allocation2 + $0x8] sm:$0xff]
    %v62 = vpack.c.bf16 %v61, %v60
    %v63 = vld [vmem:[#allocation5] sm:$0xf]
    %v64 = vld [vmem:[#allocation5 + $0x4] sm:$0xf]
    %v65 = vld [vmem:[#allocation5 + $0x8] sm:$0xf]
    %v66 = vld [vmem:[#allocation5 + $0xc] sm:$0xf]
    %v67 = vld [vmem:[%s3] sm:$0x1]
    %v68 = vlaneseq
    %v69 = vshrl.u32 %v68, 7
    %v70 = vsub.s32 0, %v69
    %v71 = vrot.slane %v67, %v70
    %v76 = vunpack.c.l.b16 %v63
    %v77 = vunpack.c.l.b16 %v64
    %v78 = vunpack.c.l.b16 %v65
    %v79 = vunpack.c.l.b16 %v66
    %v80 = vpack.c.b16 %v77, %v76
    %v81 = vpack.c.b16 %v79, %v78
    %vm84 = vcmask 261120
    %v86 = vsel %vm84, %v62, 0
    %88 = vmatprep.subr.bf16.mxu0 0
    %89 = vmatpush1.bf16.msra.mxu0 0
    %90 = vmatprep.subr.bf16.mxu0 0
    %91 = vmatpush1.bf16.msra.mxu0 0
    %92 = vmatprep.subr.bf16.mxu0 0
    %93 = vmatpush1.bf16.msra.mxu0 0
    %94 = vmatprep.subr.bf16.mxu0 0
    %95 = vmatpush1.bf16.msra.mxu0 0
    %96 = vmatprep.subr.bf16.mxu0 0
    %97 = vmatpush1.bf16.msra.mxu0 0
    %98 = vmatprep.subr.bf16.mxu0 0
    %99 = vmatpush1.bf16.msra.mxu0 0
    %100 = vmatprep.subr.bf16.mxu0 0
    %101 = vmatpush1.bf16.msra.mxu0 %v81
    %102 = vmatprep.subr.bf16.mxu0 0
    %103 = vmatpush1.bf16.msra.mxu0 %v80
    %104 = vmatprep.subr.bf16.mxu0 0
    %105 = vmatpush2.bf16.msra.mxu0 0
    %106 = vmatprep.subr.bf16.mxu0 0
    %107 = vmatpush2.bf16.msra.mxu0 0
    %108 = vmatprep.subr.bf16.mxu0 0
    %109 = vmatpush2.bf16.msra.mxu0 0
    %110 = vmatprep.subr.bf16.mxu0 0
    %111 = vmatpush2.bf16.msra.mxu0 0
    %112 = vmatprep.subr.bf16.mxu0 0
    %113 = vmatpush2.bf16.msra.mxu0 0
    %114 = vmatprep.subr.bf16.mxu0 0
    %115 = vmatpush2.bf16.msra.mxu0 0
    %116 = vmatprep.subr.bf16.mxu0 0
    %117 = vmatpush2.bf16.msra.mxu0 0
    %118 = vmatprep.subr.bf16.mxu0 0
    %119 = vmatpush2.bf16.msra.mxu0 0
    %120 = vmatprep.mubr.bf16.mxu0 0
    %121 = vmatmul.mubr.bf16.gmra.mxu0 %v86
    %v122 = vpop.f32.mrf.mxu0
    %v123 = vadd.f32 %v71, %v122
    %v124 = vpop.f32.mrf.mxu0
    %v125 = vpop.f32.mrf.mxu0
    %v126 = vadd.f32 %v71, %v125
    %v127 = vpop.f32.mrf.mxu0
    %128 = vdwg.mxu0
    %v129 = vmul.f32 %v123, 0.5
    %v130 = vmul.f32 %v126, 0.5
    %v131 = vmul.f32 %v123, 0.70710677
    %v132 = vmul.f32 %v126, 0.70710677
    %v133 = verf.f32.pop %v131
    %v134 = verf.f32.pop %v132
    %v135 = vadd.f32 %v133, 1.0
    %v136 = vadd.f32 %v134, 1.0
    %v137 = vmul.f32 %v129, %v135
    %v138 = vmul.f32 %v130, %v136
    %v139 = vpack.c.bf16 %v138, %v137
    %v140 = vld [vmem:[#allocation7] sm:$0xf]
    %v141 = vld [vmem:[#allocation7 + $0x4] sm:$0xf]
    %v142 = vld [vmem:[#allocation7 + $0x8] sm:$0xf]
    %v143 = vld [vmem:[#allocation7 + $0xc] sm:$0xf]
    %v144 = vld [vmem:[%s3 + $0x1] sm:$0x1]
    %v145 = vlaneseq
    %v146 = vshrl.u32 %v145, 7
    %v147 = vsub.s32 0, %v146
    %v148 = vrot.slane %v144, %v147
    %v153 = vunpack.c.l.b16 %v140
    %v154 = vunpack.c.l.b16 %v141
    %v155 = vunpack.c.l.b16 %v142
    %v156 = vunpack.c.l.b16 %v143
    %v157 = vpack.c.b16 %v154, %v153
    %v158 = vpack.c.b16 %v156, %v155
    %v162 = vsel %vm84, %v139, 0
    %164 = vmatprep.subr.bf16.mxu0 0
    %165 = vmatpush1.bf16.msra.mxu0 0
    %166 = vmatprep.subr.bf16.mxu0 0
    %167 = vmatpush1.bf16.msra.mxu0 0
    %168 = vmatprep.subr.bf16.mxu0 0
    %169 = vmatpush1.bf16.msra.mxu0 0
    %170 = vmatprep.subr.bf16.mxu0 0
    %171 = vmatpush1.bf16.msra.mxu0 0
    %172 = vmatprep.subr.bf16.mxu0 0
    %173 = vmatpush1.bf16.msra.mxu0 0
    %174 = vmatprep.subr.bf16.mxu0 0
    %175 = vmatpush1.bf16.msra.mxu0 0
    %176 = vmatprep.subr.bf16.mxu0 0
    %177 = vmatpush1.bf16.msra.mxu0 %v158
    %178 = vmatprep.subr.bf16.mxu0 0
    %179 = vmatpush1.bf16.msra.mxu0 %v157
    %180 = vmatprep.subr.bf16.mxu0 0
    %181 = vmatpush2.bf16.msra.mxu0 0
    %182 = vmatprep.subr.bf16.mxu0 0
    %183 = vmatpush2.bf16.msra.mxu0 0
    %184 = vmatprep.subr.bf16.mxu0 0
    %185 = vmatpush2.bf16.msra.mxu0 0
    %186 = vmatprep.subr.bf16.mxu0 0
    %187 = vmatpush2.bf16.msra.mxu0 0
    %188 = vmatprep.subr.bf16.mxu0 0
    %189 = vmatpush2.bf16.msra.mxu0 0
    %190 = vmatprep.subr.bf16.mxu0 0
    %191 = vmatpush2.bf16.msra.mxu0 0
    %192 = vmatprep.subr.bf16.mxu0 0
    %193 = vmatpush2.bf16.msra.mxu0 0
    %194 = vmatprep.subr.bf16.mxu0 0
    %195 = vmatpush2.bf16.msra.mxu0 0
    %196 = vmatprep.mubr.bf16.mxu0 0
    %197 = vmatmul.mubr.bf16.gmra.mxu0 %v162
    %v198 = vpop.f32.mrf.mxu0
    %v199 = vadd.f32 %v148, %v198
    %v200 = vpop.f32.mrf.mxu0
    %v201 = vpop.f32.mrf.mxu0
    %v202 = vadd.f32 %v148, %v201
    %v203 = vpop.f32.mrf.mxu0
    %204 = vdwg.mxu0
    %v205 = vadd.f32 %v199, %v60
    %v206 = vadd.f32 %v202, %v61
    %207 = vst.msk [vmem:[#allocation8] sm:$0xff] %vm84, %v205
    %208 = vst.msk [vmem:[#allocation8 + $0x8] sm:$0xff] %vm84, %v206
    // Predicated region
    $region30: #{tpu_custom_call.1} parent=1 // pred_check
      _
    $region31: #{tpu_custom_call.1} parent=1 // pred_check_branch
      %210 = sbr.rel (0) target = $region33
    $region32: #{tpu_custom_call.1} parent=1 // pred_region
      %s212 = ssub.s32 256, 256
      %213 = vsyncadd [#allocation4], %s212
      %s214 = sshll.u32 [#allocation8], 4
      %s215 = int_to_ptr.vmem [resolvable:$true] %s214
      %220 = dma.vmem_to_hbm [thread:$0]  %s215, 256, %s4, [#allocation4], 128, 128, 8
    $region33: #{tpu_custom_call.1} parent=1 // pred_fallthru
      _
    // Predicated region
    $region34: #{tpu_custom_call.1} parent=1 // pred_check
      _
    $region35: #{tpu_custom_call.1} parent=1 // pred_check_branch
      %222 = sbr.rel (0) target = $region37
    $region36: #{tpu_custom_call.1} parent=1 // pred_region
      %223 = dma.done [#allocation4], 256
    $region37: #{tpu_custom_call.1} parent=1 // pred_fallthru
      _
    %224 = vsyncpa [#allocation3], 1
    %225 = vsyncpa [#allocation6], 1
    %226 = vsyncpa [#allocation4], 1

</llo_original>
